<compile_context>
chip_gen: v5e
topology: v5e:2x2
jax: 0.10.0
libtpu: 0.0.40
codegen_flags: <defaults>
</compile_context>

<pallas_src>
import functools

import jax
import jax.numpy as jnp
from jax import lax
from jax.experimental import pallas as pl
from jax.experimental.pallas import tpu as pltpu


def _round_up(x, m):
    return (x + m - 1) // m * m


# ----------------------------- Pallas kernel ------------------------------ #
def _downsample_kernel(ph_ref, w_ref, conv_ref, pool_ref, *,
                       c_in, c_conv, bc, cw, l_out, chunk):
    # ph_ref  : (1, 8*c_in, L_in)    phase-decomposed padded input; lane = flat spatial
    #           row = ((pd*2+ph)*2+pw)*c_in + ci ; col = a*B*C + b*C + c
    # w_ref   : (8, c_conv, 8*c_in)  group-merged conv weight (virtual 4^3, zero padded)
    # conv_ref: (1, c_conv, L_out)   ReLU(conv) result
    # pool_ref: (1, c_in,  L_out)    ReLU(maxpool) result
    w = w_ref[...]                                     # loaded once, grid-invariant

    for c0 in range(0, l_out, chunk):                  # static lane-chunk loop
        cl = min(chunk, l_out - c0)
        acc = None
        pool = None
        for gd in range(2):
            for gh in range(2):
                for gw in range(2):
                    g = (gd * 2 + gh) * 2 + gw
                    off = gd * bc + gh * cw + gw
                    # one wide-K RHS load per group (contiguous, lane slice)
                    rhs = ph_ref[0, :, pl.ds(c0 + off, cl)]        # (8*c_in, cl)
                    part = jnp.dot(w[g], rhs, preferred_element_type=jnp.float32)
                    acc = part if acc is None else acc + part
                    # the single pool window living in this group (parity = 1-bit)
                    prow = (((1 - gd) * 2 + (1 - gh)) * 2 + (1 - gw)) * c_in
                    win = rhs[prow:prow + c_in, :].astype(jnp.float32)
                    pool = win if pool is None else jnp.maximum(pool, win)
        conv_ref[0, :, pl.ds(c0, cl)] = jnp.maximum(acc, 0.0).astype(conv_ref.dtype)
        pool_ref[0, :, pl.ds(c0, cl)] = jnp.maximum(pool, 0.0).astype(pool_ref.dtype)


# ------------------------------- wrapper ----------------------------------- #
def downsample_block3d(x_ncdhw, weight, *, k=3, s=2, p=1, compute_dtype=None):
    """x_ncdhw: (N, C_in, D, H, W); weight: (C_conv, C_in, 3, 3, 3) [PyTorch layout].
    Returns (N, C_in + C_conv, D//2, H//2, W//2), matching the PyTorch module.
    compute_dtype=jnp.bfloat16 stores phases/weights in bf16 (f32 accumulation)."""
    assert (k, s, p) == (3, 2, 1), "kernel specialized for k=3, s=2, p=1"
    N, C_in, D, H, W = x_ncdhw.shape
    C_conv = weight.shape[0]
    assert weight.shape == (C_conv, C_in, 3, 3, 3) and C_conv >= 1
    C_out = C_conv + C_in
    assert D % 2 == 0 and H % 2 == 0 and W % 2 == 0
    Dout, Hout, Wout = D // 2, H // 2, W // 2          # conv out == pool out (even sizes)

    A, B, C = Dout + 1, Hout + 1, Wout + 1             # padded output grid (cropped later)
    Pq = A * B * C
    BC, Cw = B * C, C
    max_off = BC + Cw + 1                              # largest flat group offset
    L_out = _round_up(Pq, 128)                         # lane-dense output width
    L_in = _round_up(L_out + max_off, 128)             # input flat width (covers all reads)

    store_dtype = jnp.dtype(compute_dtype) if compute_dtype is not None else x_ncdhw.dtype
    out_dtype = x_ncdhw.dtype

    # --- glue: phase decomposition of the zero-padded input (one fused XLA pass) ---
    # phases[n, ((pd*2+ph)*2+pw)*C_in + ci, a*B*C + b*C + c] == x_pad[n, ci, 2a+pd, 2b+ph, 2c+pw]
    x_pad = jnp.pad(x_ncdhw, ((0, 0), (0, 0), (p, p), (p, p), (p, p)))     # (N,C_in,2A,2B,2C)
    xr = x_pad.reshape(N, C_in, A, 2, B, 2, C, 2)
    phases = jnp.transpose(xr, (0, 3, 5, 7, 1, 2, 4, 6)).reshape(N, 8 * C_in, Pq)
    phases = jnp.pad(phases, ((0, 0), (0, 0), (0, L_in - Pq))).astype(store_dtype)

    # --- group-merged weight: zero-pad to a virtual 4^3 kernel and reorder so
    #     w_g[(gd*2+gh)*2+gw, co, ((pd*2+ph)*2+pw)*C_in + ci] == weight[co,ci,2gd+pd,2gh+ph,2gw+pw]
    w4 = jnp.zeros((C_conv, C_in, 4, 4, 4), weight.dtype).at[:, :, :3, :3, :3].set(weight)
    w4 = w4.reshape(C_conv, C_in, 2, 2, 2, 2, 2, 2)        # (co, ci, gd, pd, gh, ph, gw, pw)
    w_g = jnp.transpose(w4, (2, 4, 6, 0, 3, 5, 7, 1)).reshape(8, C_conv, 8 * C_in)
    w_g = w_g.astype(store_dtype)

    # lane chunk: bound the (C_conv, chunk) f32 accumulator's vreg footprint
    chunk = min(L_out, 2048, max(128, (24576 // C_conv) // 128 * 128))

    # explicit scoped-VMEM budget (double-buffered blocks + headroom)
    isz = jnp.dtype(store_dtype).itemsize
    osz = jnp.dtype(out_dtype).itemsize
    block_bytes = (8 * C_in * L_in * isz                 # input block
                   + 8 * C_conv * 8 * C_in * isz         # weight block
                   + (C_conv + C_in) * L_out * osz)      # output blocks
    vmem_limit = int(min(127 << 20, max(2 * block_bytes + (4 << 20), 16 << 20)))

    kernel = functools.partial(_downsample_kernel, c_in=C_in, c_conv=C_conv,
                               bc=BC, cw=Cw, l_out=L_out, chunk=chunk)

    conv_flat, pool_flat = pl.pallas_call(
        kernel,
        out_shape=(jax.ShapeDtypeStruct((N, C_conv, L_out), out_dtype),
                   jax.ShapeDtypeStruct((N, C_in, L_out), out_dtype)),
        grid_spec=pltpu.PrefetchScalarGridSpec(
            num_scalar_prefetch=0,
            grid=(N,),
            in_specs=[
                pl.BlockSpec((1, 8 * C_in, L_in), lambda n: (n, 0, 0)),
                pl.BlockSpec((8, C_conv, 8 * C_in), lambda n: (0, 0, 0)),  # grid-invariant
            ],
            out_specs=[
                pl.BlockSpec((1, C_conv, L_out), lambda n: (n, 0, 0)),
                pl.BlockSpec((1, C_in, L_out), lambda n: (n, 0, 0)),
            ],
        ),
        compiler_params=pltpu.CompilerParams(
            dimension_semantics=("parallel",),
            vmem_limit_bytes=vmem_limit),
    )(phases, w_g)

    # --- glue: concat channel sections, crop padded output grid, reshape to NCDHW ---
    out = jnp.concatenate([conv_flat, pool_flat], axis=1)[:, :, :Pq]
    out = out.reshape(N, C_out, A, B, C)
    return out[:, :, :Dout, :Hout, :Wout]


# -------------------------------- main ------------------------------------- #
if __name__ == "__main__":
    key = jax.random.PRNGKey(0)
    kx, kw = jax.random.split(key)

    N, C_in, C_out = 2, 4, 8
    D = H = W = 8
    k, s, p = 3, 2, 1
    C_conv = C_out - C_in

    x = jax.random.normal(kx, (N, C_in, D, H, W), dtype=jnp.float32)
    weight = (jax.random.normal(kw, (C_conv, C_in, k, k, k), dtype=jnp.float32)
              * (1.0 / (C_in * k * k * k) ** 0.5))

    # pure-JAX reference (conv3d + maxpool3d + concat + relu), NCDHW
    ref_conv = lax.conv_general_dilated(
        x, weight, window_strides=(s, s, s),
        padding=((p, p), (p, p), (p, p)),
        dimension_numbers=("NCDHW", "OIDHW", "NCDHW"))
    ref_pool = lax.reduce_window(
        x, -jnp.inf, lax.max,
        window_dimensions=(1, 1, 2, 2, 2),
        window_strides=(1, 1, 2, 2, 2),
        padding="VALID")
    ref = jnp.maximum(jnp.concatenate([ref_conv, ref_pool], axis=1), 0.0)

    # f32 path (validation-faithful)
    y = jax.block_until_ready(downsample_block3d(x, weight, k=k, s=s, p=p))
    assert y.shape == (N, C_out, D // 2, H // 2, W // 2), y.shape
    assert jnp.allclose(y, ref, atol=1e-4, rtol=1e-4), "f32 mismatch vs reference"

    # bf16-storage path (half the HBM/VMEM bytes; f32 MXU accumulation)
    y_bf16 = jax.block_until_ready(
        downsample_block3d(x, weight, k=k, s=s, p=p, compute_dtype=jnp.bfloat16))
    assert jnp.allclose(y_bf16, ref, atol=5e-2, rtol=5e-2), "bf16 mismatch vs reference"

    print("KERNEL_OK")
</pallas_src>

<mosaic_0001>
module attributes {stable_mosaic.version = 11 : i64} {
  func.func @_downsample_kernel(%arg0: i32, %arg1: memref<1x32x256xf32, #tpu.memory_space<vmem>>, %arg2: memref<8x4x32xf32, #tpu.memory_space<vmem>>, %arg3: memref<1x4x128xf32, #tpu.memory_space<vmem>>, %arg4: memref<1x4x128xf32, #tpu.memory_space<vmem>>) attributes {dimension_semantics = [#tpu.dimension_semantics<parallel>], iteration_bounds = array<i64: 2>, scalar_prefetch = 0 : i64, scratch_operands = 0 : i64, tpu.core_type = #tpu.core_type<tc>, window_params = [{transform_indices = @transform_0, window_bounds = array<i64: 1, 32, 256>}, {pipeline_mode = #tpu.pipeline_mode<synchronous>, transform_indices = @transform_1, window_bounds = array<i64: 8, 4, 32>}, {transform_indices = @transform_2, window_bounds = array<i64: 1, 4, 128>}, {transform_indices = @transform_3, window_bounds = array<i64: 1, 4, 128>}]} {
    %c0 = arith.constant 0 : index
    %c0_0 = arith.constant 0 : index
    %c0_1 = arith.constant 0 : index
    %0 = vector.load %arg2[%c0, %c0_0, %c0_1] : memref<8x4x32xf32, #tpu.memory_space<vmem>>, vector<8x4x32xf32>
    %c0_2 = arith.constant 0 : index
    %c0_3 = arith.constant 0 : index
    %c0_4 = arith.constant 0 : index
    %1 = vector.load %arg1[%c0_2, %c0_3, %c0_4] : memref<1x32x256xf32, #tpu.memory_space<vmem>>, vector<1x32x128xf32>
    %2 = vector.shape_cast %1 : vector<1x32x128xf32> to vector<32x128xf32>
    %3 = vector.extract_strided_slice %0 {offsets = [0, 0, 0], sizes = [1, 4, 32], strides = [1, 1, 1]} : vector<8x4x32xf32> to vector<1x4x32xf32>
    %4 = vector.shape_cast %3 : vector<1x4x32xf32> to vector<4x32xf32>
    %cst = arith.constant dense<0.000000e+00> : vector<4x128xf32>
    %5 = tpu.matmul %4, %2, %cst {dimension_numbers = #tpu.dot_dimension_numbers<[1], [0], [0], [1], [0, 0, 1, 1], [], []>} : vector<4x32xf32>, vector<32x128xf32>, vector<4x128xf32> -> vector<4x128xf32>
    %6 = vector.extract_strided_slice %2 {offsets = [28, 0], sizes = [4, 128], strides = [1, 1]} : vector<32x128xf32> to vector<4x128xf32>
    %c0_5 = arith.constant 0 : index
    %c0_6 = arith.constant 0 : index
    %c1 = arith.constant 1 : index
    %7 = vector.load %arg1[%c0_5, %c0_6, %c1] : memref<1x32x256xf32, #tpu.memory_space<vmem>>, vector<1x32x128xf32>
    %8 = vector.shape_cast %7 : vector<1x32x128xf32> to vector<32x128xf32>
    %9 = vector.extract_strided_slice %0 {offsets = [1, 0, 0], sizes = [1, 4, 32], strides = [1, 1, 1]} : vector<8x4x32xf32> to vector<1x4x32xf32>
    %10 = vector.shape_cast %9 : vector<1x4x32xf32> to vector<4x32xf32>
    %cst_7 = arith.constant dense<0.000000e+00> : vector<4x128xf32>
    %11 = tpu.matmul %10, %8, %cst_7 {dimension_numbers = #tpu.dot_dimension_numbers<[1], [0], [0], [1], [0, 0, 1, 1], [], []>} : vector<4x32xf32>, vector<32x128xf32>, vector<4x128xf32> -> vector<4x128xf32>
    %12 = arith.addf %5, %11 : vector<4x128xf32>
    %13 = vector.extract_strided_slice %8 {offsets = [24, 0], sizes = [4, 128], strides = [1, 1]} : vector<32x128xf32> to vector<4x128xf32>
    %14 = arith.maximumf %6, %13 : vector<4x128xf32>
    %c0_8 = arith.constant 0 : index
    %c0_9 = arith.constant 0 : index
    %c5 = arith.constant 5 : index
    %15 = vector.load %arg1[%c0_8, %c0_9, %c5] : memref<1x32x256xf32, #tpu.memory_space<vmem>>, vector<1x32x128xf32>
    %16 = vector.shape_cast %15 : vector<1x32x128xf32> to vector<32x128xf32>
    %17 = vector.extract_strided_slice %0 {offsets = [2, 0, 0], sizes = [1, 4, 32], strides = [1, 1, 1]} : vector<8x4x32xf32> to vector<1x4x32xf32>
    %18 = vector.shape_cast %17 : vector<1x4x32xf32> to vector<4x32xf32>
    %cst_10 = arith.constant dense<0.000000e+00> : vector<4x128xf32>
    %19 = tpu.matmul %18, %16, %cst_10 {dimension_numbers = #tpu.dot_dimension_numbers<[1], [0], [0], [1], [0, 0, 1, 1], [], []>} : vector<4x32xf32>, vector<32x128xf32>, vector<4x128xf32> -> vector<4x128xf32>
    %20 = arith.addf %12, %19 : vector<4x128xf32>
    %21 = vector.extract_strided_slice %16 {offsets = [20, 0], sizes = [4, 128], strides = [1, 1]} : vector<32x128xf32> to vector<4x128xf32>
    %22 = arith.maximumf %14, %21 : vector<4x128xf32>
    %c0_11 = arith.constant 0 : index
    %c0_12 = arith.constant 0 : index
    %c6 = arith.constant 6 : index
    %23 = vector.load %arg1[%c0_11, %c0_12, %c6] : memref<1x32x256xf32, #tpu.memory_space<vmem>>, vector<1x32x128xf32>
    %24 = vector.shape_cast %23 : vector<1x32x128xf32> to vector<32x128xf32>
    %25 = vector.extract_strided_slice %0 {offsets = [3, 0, 0], sizes = [1, 4, 32], strides = [1, 1, 1]} : vector<8x4x32xf32> to vector<1x4x32xf32>
    %26 = vector.shape_cast %25 : vector<1x4x32xf32> to vector<4x32xf32>
    %cst_13 = arith.constant dense<0.000000e+00> : vector<4x128xf32>
    %27 = tpu.matmul %26, %24, %cst_13 {dimension_numbers = #tpu.dot_dimension_numbers<[1], [0], [0], [1], [0, 0, 1, 1], [], []>} : vector<4x32xf32>, vector<32x128xf32>, vector<4x128xf32> -> vector<4x128xf32>
    %28 = arith.addf %20, %27 : vector<4x128xf32>
    %29 = vector.extract_strided_slice %24 {offsets = [16, 0], sizes = [4, 128], strides = [1, 1]} : vector<32x128xf32> to vector<4x128xf32>
    %30 = arith.maximumf %22, %29 : vector<4x128xf32>
    %c0_14 = arith.constant 0 : index
    %c0_15 = arith.constant 0 : index
    %c25 = arith.constant 25 : index
    %31 = vector.load %arg1[%c0_14, %c0_15, %c25] : memref<1x32x256xf32, #tpu.memory_space<vmem>>, vector<1x32x128xf32>
    %32 = vector.shape_cast %31 : vector<1x32x128xf32> to vector<32x128xf32>
    %33 = vector.extract_strided_slice %0 {offsets = [4, 0, 0], sizes = [1, 4, 32], strides = [1, 1, 1]} : vector<8x4x32xf32> to vector<1x4x32xf32>
    %34 = vector.shape_cast %33 : vector<1x4x32xf32> to vector<4x32xf32>
    %cst_16 = arith.constant dense<0.000000e+00> : vector<4x128xf32>
    %35 = tpu.matmul %34, %32, %cst_16 {dimension_numbers = #tpu.dot_dimension_numbers<[1], [0], [0], [1], [0, 0, 1, 1], [], []>} : vector<4x32xf32>, vector<32x128xf32>, vector<4x128xf32> -> vector<4x128xf32>
    %36 = arith.addf %28, %35 : vector<4x128xf32>
    %37 = vector.extract_strided_slice %32 {offsets = [12, 0], sizes = [4, 128], strides = [1, 1]} : vector<32x128xf32> to vector<4x128xf32>
    %38 = arith.maximumf %30, %37 : vector<4x128xf32>
    %c0_17 = arith.constant 0 : index
    %c0_18 = arith.constant 0 : index
    %c26 = arith.constant 26 : index
    %39 = vector.load %arg1[%c0_17, %c0_18, %c26] : memref<1x32x256xf32, #tpu.memory_space<vmem>>, vector<1x32x128xf32>
    %40 = vector.shape_cast %39 : vector<1x32x128xf32> to vector<32x128xf32>
    %41 = vector.extract_strided_slice %0 {offsets = [5, 0, 0], sizes = [1, 4, 32], strides = [1, 1, 1]} : vector<8x4x32xf32> to vector<1x4x32xf32>
    %42 = vector.shape_cast %41 : vector<1x4x32xf32> to vector<4x32xf32>
    %cst_19 = arith.constant dense<0.000000e+00> : vector<4x128xf32>
    %43 = tpu.matmul %42, %40, %cst_19 {dimension_numbers = #tpu.dot_dimension_numbers<[1], [0], [0], [1], [0, 0, 1, 1], [], []>} : vector<4x32xf32>, vector<32x128xf32>, vector<4x128xf32> -> vector<4x128xf32>
    %44 = arith.addf %36, %43 : vector<4x128xf32>
    %45 = vector.extract_strided_slice %40 {offsets = [8, 0], sizes = [4, 128], strides = [1, 1]} : vector<32x128xf32> to vector<4x128xf32>
    %46 = arith.maximumf %38, %45 : vector<4x128xf32>
    %c0_20 = arith.constant 0 : index
    %c0_21 = arith.constant 0 : index
    %c30 = arith.constant 30 : index
    %47 = vector.load %arg1[%c0_20, %c0_21, %c30] : memref<1x32x256xf32, #tpu.memory_space<vmem>>, vector<1x32x128xf32>
    %48 = vector.shape_cast %47 : vector<1x32x128xf32> to vector<32x128xf32>
    %49 = vector.extract_strided_slice %0 {offsets = [6, 0, 0], sizes = [1, 4, 32], strides = [1, 1, 1]} : vector<8x4x32xf32> to vector<1x4x32xf32>
    %50 = vector.shape_cast %49 : vector<1x4x32xf32> to vector<4x32xf32>
    %cst_22 = arith.constant dense<0.000000e+00> : vector<4x128xf32>
    %51 = tpu.matmul %50, %48, %cst_22 {dimension_numbers = #tpu.dot_dimension_numbers<[1], [0], [0], [1], [0, 0, 1, 1], [], []>} : vector<4x32xf32>, vector<32x128xf32>, vector<4x128xf32> -> vector<4x128xf32>
    %52 = arith.addf %44, %51 : vector<4x128xf32>
    %53 = vector.extract_strided_slice %48 {offsets = [4, 0], sizes = [4, 128], strides = [1, 1]} : vector<32x128xf32> to vector<4x128xf32>
    %54 = arith.maximumf %46, %53 : vector<4x128xf32>
    %c0_23 = arith.constant 0 : index
    %c0_24 = arith.constant 0 : index
    %c31 = arith.constant 31 : index
    %55 = vector.load %arg1[%c0_23, %c0_24, %c31] : memref<1x32x256xf32, #tpu.memory_space<vmem>>, vector<1x32x128xf32>
    %56 = vector.shape_cast %55 : vector<1x32x128xf32> to vector<32x128xf32>
    %57 = vector.extract_strided_slice %0 {offsets = [7, 0, 0], sizes = [1, 4, 32], strides = [1, 1, 1]} : vector<8x4x32xf32> to vector<1x4x32xf32>
    %58 = vector.shape_cast %57 : vector<1x4x32xf32> to vector<4x32xf32>
    %cst_25 = arith.constant dense<0.000000e+00> : vector<4x128xf32>
    %59 = tpu.matmul %58, %56, %cst_25 {dimension_numbers = #tpu.dot_dimension_numbers<[1], [0], [0], [1], [0, 0, 1, 1], [], []>} : vector<4x32xf32>, vector<32x128xf32>, vector<4x128xf32> -> vector<4x128xf32>
    %60 = arith.addf %52, %59 : vector<4x128xf32>
    %61 = vector.extract_strided_slice %56 {offsets = [0, 0], sizes = [4, 128], strides = [1, 1]} : vector<32x128xf32> to vector<4x128xf32>
    %62 = arith.maximumf %54, %61 : vector<4x128xf32>
    %cst_26 = arith.constant 0.000000e+00 : f32
    %63 = vector.broadcast %cst_26 : f32 to vector<4x128xf32>
    %64 = arith.maximumf %60, %63 : vector<4x128xf32>
    %c0_27 = arith.constant 0 : index
    %c0_28 = arith.constant 0 : index
    %c0_29 = arith.constant 0 : index
    %65 = vector.load %arg3[%c0_27, %c0_28, %c0_29] : memref<1x4x128xf32, #tpu.memory_space<vmem>>, vector<1x4x128xf32>
    %66 = vector.shape_cast %65 : vector<1x4x128xf32> to vector<4x128xf32>
    %67 = vector.shape_cast %64 : vector<4x128xf32> to vector<1x4x128xf32>
    tpu.vector_store %arg3[%c0_27, %c0_28, %c0_29], %67 {strides = array<i32>} : memref<1x4x128xf32, #tpu.memory_space<vmem>>, vector<1x4x128xf32>,
    %cst_30 = arith.constant 0.000000e+00 : f32
    %68 = vector.broadcast %cst_30 : f32 to vector<4x128xf32>
    %69 = arith.maximumf %62, %68 : vector<4x128xf32>
    %c0_31 = arith.constant 0 : index
    %c0_32 = arith.constant 0 : index
    %c0_33 = arith.constant 0 : index
    %70 = vector.load %arg4[%c0_31, %c0_32, %c0_33] : memref<1x4x128xf32, #tpu.memory_space<vmem>>, vector<1x4x128xf32>
    %71 = vector.shape_cast %70 : vector<1x4x128xf32> to vector<4x128xf32>
    %72 = vector.shape_cast %69 : vector<4x128xf32> to vector<1x4x128xf32>
    tpu.vector_store %arg4[%c0_31, %c0_32, %c0_33], %72 {strides = array<i32>} : memref<1x4x128xf32, #tpu.memory_space<vmem>>, vector<1x4x128xf32>,
    return
  }
  func.func @transform_0(%arg0: i32) -> (i32, i32, i32) {
    %c0_i32 = arith.constant 0 : i32
    %c0_i32_0 = arith.constant 0 : i32
    %c0_i32_1 = arith.constant 0 : i32
    return %arg0, %c0_i32, %c0_i32_0 : i32, i32, i32
  }
  func.func @transform_1(%arg0: i32) -> (i32, i32, i32) {
    %c0_i32 = arith.constant 0 : i32
    %c0_i32_0 = arith.constant 0 : i32
    %c0_i32_1 = arith.constant 0 : i32
    %c0_i32_2 = arith.constant 0 : i32
    return %c0_i32, %c0_i32_0, %c0_i32_1 : i32, i32, i32
  }
  func.func @transform_2(%arg0: i32) -> (i32, i32, i32) {
    %c0_i32 = arith.constant 0 : i32
    %c0_i32_0 = arith.constant 0 : i32
    %c0_i32_1 = arith.constant 0 : i32
    return %arg0, %c0_i32, %c0_i32_0 : i32, i32, i32
  }
  func.func @transform_3(%arg0: i32) -> (i32, i32, i32) {
    %c0_i32 = arith.constant 0 : i32
    %c0_i32_0 = arith.constant 0 : i32
    %c0_i32_1 = arith.constant 0 : i32
    return %arg0, %c0_i32, %c0_i32_0 : i32, i32, i32
  }
}

</mosaic_0001>

<llo_original>
// kernel: tpu_custom_call.1
$region0: #{tpu_custom_call.1}
  #allocation0 [shape = 'u32[]', space=smem, size = 0x4, offset = 0x4, fixed_abs, tag = 'smem constant byte address 0x4 - core index']
  #allocation1 [shape = 'u32[72,128]{1,0:T(1,128)}', space=vmem, size = 0x9000, scoped, tag = 'internal scratch']
  %s0 = inlined_call_operand.hbm [shape: f32[2,32,256], index: 0, kind: input, shape index: {}]
  %s1 = inlined_call_operand.hbm [shape: f32[8,4,32], index: 1, kind: input, shape index: {}]
  %s2 = inlined_call_operand.hbm [shape: f32[2,4,128], index: 2, kind: output, shape index: {0}]
  %s3 = inlined_call_operand.hbm [shape: f32[2,4,128], index: 3, kind: output, shape index: {1}]
  %4 = xla_tuple %s2, %s3
  %s5 = sld [smem:[#allocation0]]
  $region57: #{tpu_custom_call.1} parent=0
    _
  %s7 = ssub.s32 1, %s5
  %s8 = scalar_select 0, %s7, %s5
  $region1: #{tpu_custom_call.1} parent=0
    #allocation2 [shape = 'u8[65536]{0}', space=vmem, size = 0x10000, scoped, tag = 'input window, operand 0']
    #allocation3 [shape = 's32[2]{0}', space=sflag, size = 0x8, scoped, tag = 'scoped memory for tpu_custom_call.1']
    #allocation4 [shape = 's32[2]{0}', space=sflag, size = 0x8, scoped, tag = 'scoped memory for tpu_custom_call.1']
    #allocation5 [shape = 'u8[16384]{0}', space=vmem, size = 0x4000, scoped, tag = 'input window, operand 1, single buffered']
    #allocation6 [shape = 's32[1]{0}', space=sflag, size = 0x4, scoped, tag = 'scoped memory for tpu_custom_call.1']
    #allocation7 [shape = 'u8[4096]{0}', space=vmem, size = 0x1000, scoped, tag = 'output window, operand 0']
    #allocation8 [shape = 'u8[4096]{0}', space=vmem, size = 0x1000, scoped, tag = 'output window, operand 1']
    #allocation9 [shape = 's32[2]{0}', space=sflag, size = 0x8, scoped, tag = 'scoped memory for tpu_custom_call.1']
    %9 = vsyncpa [#allocation3], 0
    %s10 = scalar_lea.sflag [#allocation3], 1
    %11 = vsyncpa %s10, 0
    %12 = vsyncpa [#allocation6], 0
    %13 = vsyncpa [#allocation4], 0
    %s14 = scalar_lea.sflag [#allocation4], 1
    %15 = vsyncpa %s14, 0
    %16 = vsyncpa [#allocation9], 0
    %s17 = scalar_lea.sflag [#allocation9], 1
    %18 = vsyncpa %s17, 0
    loop: start=0, step=1, limit=4
    $region2: #{tpu_custom_call.1} parent=1 // loop_pre_header
      _
    $region3: #{tpu_custom_call.1} parent=1 // loop_header
      %s20 = sphi 0, %s24
      %p21 = scmp.ge.s32.totalorder %s20, 4
      %s30 = sphi 0, %s32
      %s33 = sphi 0, %s30
      %s34 = sphi 0, %s33
      %s50 = sphi 0, %s34
      %s54 = sphi 0, %s54
      %s56 = sphi 0, %s54
      %s57 = sphi 0, %s56
      %s71 = sphi 0, %s57
      %s77 = sphi 0, %s79
      %s80 = sphi 0, %s77
      %s81 = sphi 0, %s80
      %s97 = sphi 0, %s81
      %s103 = sphi 0, %s105
      %s106 = sphi 0, %s103
      %s107 = sphi 0, %s106
      %s123 = sphi 0, %s107
    $region4: #{tpu_custom_call.1} parent=1 // loop_header_branch
      %23 = sbr.rel (%p21) target = $region8
    $region5: #{tpu_custom_call.1} parent=1 // loop_body
      %s25 = ssub.s32 %s20, 1
      %s26 = ssub.s32 %s20, 2
      %s27 = sadd.s32 %s20, 1
      %s28 = ssub.s32 %s20, %s27
      %p29 = scmp.eq.s32.totalorder %s28, 0
      %s31 = sadd.s32 %s30, 1
      %s32 = scalar_select %p29, %s30, %s31
      %p35 = pneg %p29
      %p36 = scmp.eq.s32.totalorder %s20, 1
      %p37 = por %p35, %p36
      %p38 = scmp.ne.s32.totalorder %s30, %s33
      %p39 = scmp.eq.s32.totalorder %s20, 0
      %p40 = por %p38, %p39
      %p41 = scmp.ne.s32.totalorder %s30, %s33
      %p42 = scmp.eq.s32.totalorder %s25, 1
      %p43 = por %p41, %p42
      %p44 = scmp.ne.s32.totalorder %s33, %s34
      %p45 = scmp.eq.s32.totalorder %s25, 0
      %p46 = por %p44, %p45
      %p47 = scmp.ne.s32.totalorder %s33, %s34
      %p48 = scmp.eq.s32.totalorder %s26, 1
      %p49 = por %p47, %p48
      %p51 = scmp.ne.s32.totalorder %s34, %s50
      %p52 = scmp.eq.s32.totalorder %s26, 0
      %p53 = por %p51, %p52
      %s55 = sadd.s32 %s54, 1
      %p58 = scmp.eq.s32.totalorder %s20, 1
      %p59 = scmp.ne.s32.totalorder %s54, %s56
      %p60 = scmp.eq.s32.totalorder %s20, 0
      %p61 = por %p59, %p60
      %p62 = scmp.ne.s32.totalorder %s54, %s56
      %p63 = scmp.eq.s32.totalorder %s25, 1
      %p64 = por %p62, %p63
      %p65 = scmp.ne.s32.totalorder %s56, %s57
      %p66 = scmp.eq.s32.totalorder %s25, 0
      %p67 = por %p65, %p66
      %p68 = scmp.ne.s32.totalorder %s56, %s57
      %p69 = scmp.eq.s32.totalorder %s26, 1
      %p70 = por %p68, %p69
      %p72 = scmp.ne.s32.totalorder %s57, %s71
      %p73 = scmp.eq.s32.totalorder %s26, 0
      %p74 = por %p72, %p73
      %s75 = ssub.s32 %s20, %s27
      %p76 = scmp.eq.s32.totalorder %s75, 0
      %s78 = sadd.s32 %s77, 1
      %s79 = scalar_select %p76, %s77, %s78
      %p82 = pneg %p76
      %p83 = scmp.eq.s32.totalorder %s20, 1
      %p84 = por %p82, %p83
      %p85 = scmp.ne.s32.totalorder %s77, %s80
      %p86 = scmp.eq.s32.totalorder %s20, 0
      %p87 = por %p85, %p86
      %p88 = scmp.ne.s32.totalorder %s77, %s80
      %p89 = scmp.eq.s32.totalorder %s25, 1
      %p90 = por %p88, %p89
      %p91 = scmp.ne.s32.totalorder %s80, %s81
      %p92 = scmp.eq.s32.totalorder %s25, 0
      %p93 = por %p91, %p92
      %p94 = scmp.ne.s32.totalorder %s80, %s81
      %p95 = scmp.eq.s32.totalorder %s26, 1
      %p96 = por %p94, %p95
      %p98 = scmp.ne.s32.totalorder %s81, %s97
      %p99 = scmp.eq.s32.totalorder %s26, 0
      %p100 = por %p98, %p99
      %s101 = ssub.s32 %s20, %s27
      %p102 = scmp.eq.s32.totalorder %s101, 0
      %s104 = sadd.s32 %s103, 1
      %s105 = scalar_select %p102, %s103, %s104
      %p108 = pneg %p102
      %p109 = scmp.eq.s32.totalorder %s20, 1
      %p110 = por %p108, %p109
      %p111 = scmp.ne.s32.totalorder %s103, %s106
      %p112 = scmp.eq.s32.totalorder %s20, 0
      %p113 = por %p111, %p112
      %p114 = scmp.ne.s32.totalorder %s103, %s106
      %p115 = scmp.eq.s32.totalorder %s25, 1
      %p116 = por %p114, %p115
      %p117 = scmp.ne.s32.totalorder %s106, %s107
      %p118 = scmp.eq.s32.totalorder %s25, 0
      %p119 = por %p117, %p118
      %p120 = scmp.ne.s32.totalorder %s106, %s107
      %p121 = scmp.eq.s32.totalorder %s26, 1
      %p122 = por %p120, %p121
      %p124 = scmp.ne.s32.totalorder %s107, %s123
      %p125 = scmp.eq.s32.totalorder %s26, 0
      %p126 = por %p124, %p125
      %p127 = scmp.le.s32.totalorder 1, %s20
      %p128 = scmp.lt.s32.totalorder %s20, 3
      %p129 = pnand %p127, %p128
      %p130 = pneg %p129
      // Predicated region
      $region9: #{tpu_custom_call.1} parent=5 // pred_check
        _
      $region10: #{tpu_custom_call.1} parent=5 // pred_check_branch
        %132 = sbr.rel (%p129) target = $region12
      $region11: #{tpu_custom_call.1} parent=5 // pred_region
        %s133 = ssub.s32 %s20, 1
        // Predicated region
        $region13: #{tpu_custom_call.1} parent=11 // pred_check
          %p134 = pneg %p67
        $region14: #{tpu_custom_call.1} parent=11 // pred_check_branch
          %136 = sbr.rel (%p134) target = $region16
        $region15: #{tpu_custom_call.1} parent=11 // pred_region
          %138 = vsyncadd [#allocation6], 0
          %s139 = sshll.u32 %s1, 4
          %s140 = int_to_ptr.hbm [resolvable:$true] %s139
          %s141 = sshll.u32 [#allocation5], 4
          %s142 = int_to_ptr.vmem [resolvable:$true] %s141
          %147 = dma.hbm_to_vmem [thread:$0]  %s140, 512, %s142, [#allocation6], 64, 64, 4
        $region16: #{tpu_custom_call.1} parent=11 // pred_fallthru
          _
      $region12: #{tpu_custom_call.1} parent=5 // pred_fallthru
        _
      %p148 = scmp.lt.s32.totalorder %s20, 2
      // Predicated region
      $region17: #{tpu_custom_call.1} parent=5 // pred_check
        %p149 = pneg %p148
      $region18: #{tpu_custom_call.1} parent=5 // pred_check_branch
        %151 = sbr.rel (%p149) target = $region20
      $region19: #{tpu_custom_call.1} parent=5 // pred_region
        // Predicated region
        $region21: #{tpu_custom_call.1} parent=19 // pred_check
          %p152 = pneg %p40
        $region22: #{tpu_custom_call.1} parent=19 // pred_check_branch
          %154 = sbr.rel (%p152) target = $region24
        $region23: #{tpu_custom_call.1} parent=19 // pred_region
          %s155 = sand.u32 %s30, 1
          %s156 = scalar_lea.sflag [#allocation3], %s155
          %s157 = sand.u32 %s30, 1
          %s158 = smul.addr %s157, 64
          %s159 = scalar_lea.vmem [#allocation2], %s158
          %161 = vsyncadd %s156, 0
          %s162 = smul.addr %s20, 8
          %s163 = smul.addr %s162, 8
          %s164 = scalar_lea.hbm %s0, %s163
          %s165 = sshll.u32 %s164, 4
          %s166 = int_to_ptr.hbm [resolvable:$true] %s165
          %s167 = sshll.u32 %s159, 4
          %s168 = int_to_ptr.vmem [resolvable:$true] %s167
          %173 = dma.hbm_to_vmem [thread:$0]  %s166, 1024, %s168, %s156, 256, 256, 16
        $region24: #{tpu_custom_call.1} parent=19 // pred_fallthru
          _
      $region20: #{tpu_custom_call.1} parent=5 // pred_fallthru
        _
      %p174 = scmp.le.s32.totalorder 1, %s20
      %p175 = scmp.lt.s32.totalorder %s20, 3
      %p176 = pnand %p174, %p175
      %p177 = pneg %p176
      // Predicated region
      $region25: #{tpu_custom_call.1} parent=5 // pred_check
        _
      $region26: #{tpu_custom_call.1} parent=5 // pred_check_branch
        %179 = sbr.rel (%p176) target = $region28
      $region27: #{tpu_custom_call.1} parent=5 // pred_region
        %s180 = ssub.s32 %s20, 1
        %s181 = sand.u32 %s33, 1
        %s182 = scalar_lea.sflag [#allocation3], %s181
        %s183 = sand.u32 %s33, 1
        %s184 = smul.addr %s183, 64
        %s185 = scalar_lea.vmem [#allocation2], %s184
        // Predicated region
        $region29: #{tpu_custom_call.1} parent=27 // pred_check
          %p186 = pneg %p46
        $region30: #{tpu_custom_call.1} parent=27 // pred_check_branch
          %188 = sbr.rel (%p186) target = $region32
        $region31: #{tpu_custom_call.1} parent=27 // pred_region
          %190 = dma.done %s182, 1024
        $region32: #{tpu_custom_call.1} parent=27 // pred_fallthru
          _
        // Predicated region
        $region33: #{tpu_custom_call.1} parent=27 // pred_check
          %p191 = pneg %p67
        $region34: #{tpu_custom_call.1} parent=27 // pred_check_branch
          %193 = sbr.rel (%p191) target = $region36
        $region35: #{tpu_custom_call.1} parent=27 // pred_region
          %195 = dma.done [#allocation6], 512
        $region36: #{tpu_custom_call.1} parent=27 // pred_fallthru
          _
        %s196 = sand.u32 %s33, 1
        %s197 = scalar_lea.sflag [#allocation3], %s196
        %s198 = sand.u32 %s33, 1
        %s199 = smul.addr %s198, 64
        %s200 = scalar_lea.vmem [#allocation2], %s199
        %p201 = pneg %p46
        %p202 = pneg %p43
        %p203 = pneg %p67
        %p204 = pneg %p64
        %p205 = pneg %p93
        %p206 = pneg %p90
        %s207 = sand.u32 %s80, 1
        %s208 = scalar_lea.sflag [#allocation4], %s207
        %s209 = sand.u32 %s80, 1
        %s210 = smul.addr %s209, 4
        %s211 = scalar_lea.vmem [#allocation7], %s210
        %p212 = pneg %p119
        %p213 = pneg %p116
        %s214 = sand.u32 %s106, 1
        %s215 = scalar_lea.sflag [#allocation9], %s214
        %s216 = sand.u32 %s106, 1
        %s217 = smul.addr %s216, 4
        %s218 = scalar_lea.vmem [#allocation8], %s217
        %v219 = vld [vmem:[#allocation5] sm:$0xf]
        %v220 = vld [vmem:[#allocation5 + $0x4] sm:$0xf]
        %v221 = vld [vmem:[#allocation5 + $0x8] sm:$0xf]
        %v222 = vld [vmem:[#allocation5 + $0xc] sm:$0xf]
        %v223 = vld [vmem:[#allocation5 + $0x10] sm:$0xf]
        %v224 = vld [vmem:[#allocation5 + $0x14] sm:$0xf]
        %v225 = vld [vmem:[#allocation5 + $0x18] sm:$0xf]
        %v226 = vld [vmem:[#allocation5 + $0x1c] sm:$0xf]
        %v227 = vld [vmem:[%s185] sm:$0xff]
        %v228 = vld [vmem:[%s185 + $0x10] sm:$0xff]
        %v229 = vld [vmem:[%s185 + $0x20] sm:$0xff]
        %v230 = vld [vmem:[%s185 + $0x30] sm:$0xff]
        %v231 = vld [vmem:[%s185] sm:$0xff]
        %v232 = vld [vmem:[%s185 + $0x8] sm:$0xff]
        %v233 = vld [vmem:[%s185 + $0x10] sm:$0xff]
        %v234 = vld [vmem:[%s185 + $0x18] sm:$0xff]
        %v235 = vld [vmem:[%s185 + $0x20] sm:$0xff]
        %v236 = vld [vmem:[%s185 + $0x28] sm:$0xff]
        %v237 = vld [vmem:[%s185 + $0x30] sm:$0xff]
        %v238 = vld [vmem:[%s185 + $0x38] sm:$0xff]
        %247 = vrot.lane.b32.xlu0 %v231, 127
        %v248 = vpop.permute.xlu0 %247
        %249 = vrot.lane.b32.xlu0 %v232, 127
        %v250 = vpop.permute.xlu0 %249
        %251 = vrot.lane.b32.xlu0 %v233, 127
        %v252 = vpop.permute.xlu0 %251
        %253 = vrot.lane.b32.xlu0 %v234, 127
        %v254 = vpop.permute.xlu0 %253
        %255 = vrot.lane.b32.xlu0 %v235, 127
        %v256 = vpop.permute.xlu0 %255
        %257 = vrot.lane.b32.xlu0 %v236, 127
        %v258 = vpop.permute.xlu0 %257
        %259 = vrot.lane.b32.xlu0 %v237, 127
        %v260 = vpop.permute.xlu0 %259
        %261 = vrot.lane.b32.xlu0 %v238, 127
        %v262 = vpop.permute.xlu0 %261
        %vm263 = vcmask 1039360
        %v264 = vsel %vm263, %v248, %v250
        %v265 = vsel %vm263, %v252, %v254
        %v266 = vsel %vm263, %v256, %v258
        %v267 = vsel %vm263, %v260, %v262
        %vm272 = vcmask 261120
        %v274 = vsel %vm272, %v220, 0
        %276 = vmatpush.msra.mxu0 0.0
        %277 = vmatpush.msra.mxu0 0.0
        %278 = vmatpush.msra.mxu0 0.0
        %279 = vmatpush.msra.mxu0 0.0
        %280 = vmatpush.msra.mxu0 0.0
        %281 = vmatpush.msra.mxu0 0.0
        %282 = vmatpush.msra.mxu0 0.0
        %283 = vmatpush.msra.mxu0 0.0
        %284 = vmatpush.msra.mxu0 0.0
        %285 = vmatpush.msra.mxu0 0.0
        %286 = vmatpush.msra.mxu0 0.0
        %287 = vmatpush.msra.mxu0 0.0
        %288 = vmatpush.msra.mxu0 %v267
        %289 = vmatpush.msra.mxu0 %v266
        %290 = vmatpush.msra.mxu0 %v265
        %291 = vmatpush.msra.mxu0 %v264
        %292 = vmatmul.f32.gmra.mxu0 %v274
        %v293 = vpop.f32.mrf.mxu0
        %v294 = vadd.f32 0.0, %v293
        %295 = vdwg.mxu0
        %v297 = vsel %vm272, %v219, 0
        %299 = vmatpush.msra.mxu0 0.0
        %300 = vmatpush.msra.mxu0 0.0
        %301 = vmatpush.msra.mxu0 0.0
        %302 = vmatpush.msra.mxu0 0.0
        %303 = vmatpush.msra.mxu0 0.0
        %304 = vmatpush.msra.mxu0 0.0
        %305 = vmatpush.msra.mxu0 0.0
        %306 = vmatpush.msra.mxu0 0.0
        %307 = vmatpush.msra.mxu0 0.0
        %308 = vmatpush.msra.mxu0 0.0
        %309 = vmatpush.msra.mxu0 0.0
        %310 = vmatpush.msra.mxu0 0.0
        %311 = vmatpush.msra.mxu0 %v230
        %312 = vmatpush.msra.mxu0 %v229
        %313 = vmatpush.msra.mxu0 %v228
        %314 = vmatpush.msra.mxu0 %v227
        %315 = vmatmul.f32.gmra.mxu0 %v297
        %v316 = vpop.f32.mrf.mxu0
        %v317 = vadd.f32 %v294, %v316
        %318 = vdwg.mxu0
        %v319 = vrot.slane %v237, 4
        %v320 = vrot.slane %v238, 4
        %321 = vrot.lane.b32.xlu0 %v319, 127
        %v322 = vpop.permute.xlu0 %321
        %323 = vrot.lane.b32.xlu0 %v320, 127
        %v324 = vpop.permute.xlu0 %323
        %v325 = vsel %vm263, %v322, %v324
        %v327 = vmax.f32 %v230, %v325
        %328 = vrot.lane.b32.xlu0 %v231, 123
        %v329 = vpop.permute.xlu0 %328
        %330 = vrot.lane.b32.xlu0 %v232, 123
        %v331 = vpop.permute.xlu0 %330
        %332 = vrot.lane.b32.xlu0 %v233, 123
        %v333 = vpop.permute.xlu0 %332
        %334 = vrot.lane.b32.xlu0 %v234, 123
        %v335 = vpop.permute.xlu0 %334
        %336 = vrot.lane.b32.xlu0 %v235, 123
        %v337 = vpop.permute.xlu0 %336
        %338 = vrot.lane.b32.xlu0 %v236, 123
        %v339 = vpop.permute.xlu0 %338
        %340 = vrot.lane.b32.xlu0 %v237, 123
        %v341 = vpop.permute.xlu0 %340
        %342 = vrot.lane.b32.xlu0 %v238, 123
        %v343 = vpop.permute.xlu0 %342
        %vm344 = vcmask 1006592
        %v345 = vsel %vm344, %v329, %v331
        %v346 = vsel %vm344, %v333, %v335
        %v347 = vsel %vm344, %v337, %v339
        %v348 = vsel %vm344, %v341, %v343
        %v354 = vsel %vm272, %v221, 0
        %356 = vmatpush.msra.mxu0 0.0
        %357 = vmatpush.msra.mxu0 0.0
        %358 = vmatpush.msra.mxu0 0.0
        %359 = vmatpush.msra.mxu0 0.0
        %360 = vmatpush.msra.mxu0 0.0
        %361 = vmatpush.msra.mxu0 0.0
        %362 = vmatpush.msra.mxu0 0.0
        %363 = vmatpush.msra.mxu0 0.0
        %364 = vmatpush.msra.mxu0 0.0
        %365 = vmatpush.msra.mxu0 0.0
        %366 = vmatpush.msra.mxu0 0.0
        %367 = vmatpush.msra.mxu0 0.0
        %368 = vmatpush.msra.mxu0 %v348
        %369 = vmatpush.msra.mxu0 %v347
        %370 = vmatpush.msra.mxu0 %v346
        %371 = vmatpush.msra.mxu0 %v345
        %372 = vmatmul.f32.gmra.mxu0 %v354
        %v373 = vpop.f32.mrf.mxu0
        %v374 = vadd.f32 0.0, %v373
        %375 = vdwg.mxu0
        %v376 = vadd.f32 %v317, %v374
        %v377 = vmax.f32 %v327, %v347
        %378 = vrot.lane.b32.xlu0 %v231, 122
        %v379 = vpop.permute.xlu0 %378
        %380 = vrot.lane.b32.xlu0 %v232, 122
        %v381 = vpop.permute.xlu0 %380
        %382 = vrot.lane.b32.xlu0 %v233, 122
        %v383 = vpop.permute.xlu0 %382
        %384 = vrot.lane.b32.xlu0 %v234, 122
        %v385 = vpop.permute.xlu0 %384
        %386 = vrot.lane.b32.xlu0 %v235, 122
        %v387 = vpop.permute.xlu0 %386
        %388 = vrot.lane.b32.xlu0 %v236, 122
        %v389 = vpop.permute.xlu0 %388
        %390 = vrot.lane.b32.xlu0 %v237, 122
        %v391 = vpop.permute.xlu0 %390
        %392 = vrot.lane.b32.xlu0 %v238, 122
        %v393 = vpop.permute.xlu0 %392
        %vm394 = vcmask 998400
        %v395 = vsel %vm394, %v379, %v381
        %v396 = vsel %vm394, %v383, %v385
        %v397 = vsel %vm394, %v387, %v389
        %v398 = vsel %vm394, %v391, %v393
        %v404 = vsel %vm272, %v222, 0
        %406 = vmatpush.msra.mxu0 0.0
        %407 = vmatpush.msra.mxu0 0.0
        %408 = vmatpush.msra.mxu0 0.0
        %409 = vmatpush.msra.mxu0 0.0
        %410 = vmatpush.msra.mxu0 0.0
        %411 = vmatpush.msra.mxu0 0.0
        %412 = vmatpush.msra.mxu0 0.0
        %413 = vmatpush.msra.mxu0 0.0
        %414 = vmatpush.msra.mxu0 0.0
        %415 = vmatpush.msra.mxu0 0.0
        %416 = vmatpush.msra.mxu0 0.0
        %417 = vmatpush.msra.mxu0 0.0
        %418 = vmatpush.msra.mxu0 %v398
        %419 = vmatpush.msra.mxu0 %v397
        %420 = vmatpush.msra.mxu0 %v396
        %421 = vmatpush.msra.mxu0 %v395
        %422 = vmatmul.f32.gmra.mxu0 %v404
        %v423 = vpop.f32.mrf.mxu0
        %v424 = vadd.f32 0.0, %v423
        %425 = vdwg.mxu0
        %v426 = vadd.f32 %v376, %v424
        %v427 = vrot.slane %v235, 4
        %v428 = vrot.slane %v236, 4
        %429 = vrot.lane.b32.xlu0 %v427, 122
        %v430 = vpop.permute.xlu0 %429
        %431 = vrot.lane.b32.xlu0 %v428, 122
        %v432 = vpop.permute.xlu0 %431
        %v433 = vsel %vm394, %v430, %v432
        %v435 = vmax.f32 %v377, %v433
        %436 = vrot.lane.b32.xlu0 %v231, 103
        %v437 = vpop.permute.xlu0 %436
        %438 = vrot.lane.b32.xlu0 %v232, 103
        %v439 = vpop.permute.xlu0 %438
        %440 = vrot.lane.b32.xlu0 %v233, 103
        %v441 = vpop.permute.xlu0 %440
        %442 = vrot.lane.b32.xlu0 %v234, 103
        %v443 = vpop.permute.xlu0 %442
        %444 = vrot.lane.b32.xlu0 %v235, 103
        %v445 = vpop.permute.xlu0 %444
        %446 = vrot.lane.b32.xlu0 %v236, 103
        %v447 = vpop.permute.xlu0 %446
        %448 = vrot.lane.b32.xlu0 %v237, 103
        %v449 = vpop.permute.xlu0 %448
        %450 = vrot.lane.b32.xlu0 %v238, 103
        %v451 = vpop.permute.xlu0 %450
        %vm452 = vcmask 842752
        %v453 = vsel %vm452, %v437, %v439
        %v454 = vsel %vm452, %v441, %v443
        %v455 = vsel %vm452, %v445, %v447
        %v456 = vsel %vm452, %v449, %v451
        %v462 = vsel %vm272, %v223, 0
        %464 = vmatpush.msra.mxu0 0.0
        %465 = vmatpush.msra.mxu0 0.0
        %466 = vmatpush.msra.mxu0 0.0
        %467 = vmatpush.msra.mxu0 0.0
        %468 = vmatpush.msra.mxu0 0.0
        %469 = vmatpush.msra.mxu0 0.0
        %470 = vmatpush.msra.mxu0 0.0
        %471 = vmatpush.msra.mxu0 0.0
        %472 = vmatpush.msra.mxu0 0.0
        %473 = vmatpush.msra.mxu0 0.0
        %474 = vmatpush.msra.mxu0 0.0
        %475 = vmatpush.msra.mxu0 0.0
        %476 = vmatpush.msra.mxu0 %v456
        %477 = vmatpush.msra.mxu0 %v455
        %478 = vmatpush.msra.mxu0 %v454
        %479 = vmatpush.msra.mxu0 %v453
        %480 = vmatmul.f32.gmra.mxu0 %v462
        %v481 = vpop.f32.mrf.mxu0
        %v482 = vadd.f32 0.0, %v481
        %483 = vdwg.mxu0
        %v484 = vadd.f32 %v426, %v482
        %v485 = vmax.f32 %v435, %v454
        %486 = vrot.lane.b32.xlu0 %v231, 102
        %v487 = vpop.permute.xlu0 %486
        %488 = vrot.lane.b32.xlu0 %v232, 102
        %v489 = vpop.permute.xlu0 %488
        %490 = vrot.lane.b32.xlu0 %v233, 102
        %v491 = vpop.permute.xlu0 %490
        %492 = vrot.lane.b32.xlu0 %v234, 102
        %v493 = vpop.permute.xlu0 %492
        %494 = vrot.lane.b32.xlu0 %v235, 102
        %v495 = vpop.permute.xlu0 %494
        %496 = vrot.lane.b32.xlu0 %v236, 102
        %v497 = vpop.permute.xlu0 %496
        %498 = vrot.lane.b32.xlu0 %v237, 102
        %v499 = vpop.permute.xlu0 %498
        %500 = vrot.lane.b32.xlu0 %v238, 102
        %v501 = vpop.permute.xlu0 %500
        %vm502 = vcmask 834560
        %v503 = vsel %vm502, %v487, %v489
        %v504 = vsel %vm502, %v491, %v493
        %v505 = vsel %vm502, %v495, %v497
        %v506 = vsel %vm502, %v499, %v501
        %v512 = vsel %vm272, %v224, 0
        %514 = vmatpush.msra.mxu0 0.0
        %515 = vmatpush.msra.mxu0 0.0
        %516 = vmatpush.msra.mxu0 0.0
        %517 = vmatpush.msra.mxu0 0.0
        %518 = vmatpush.msra.mxu0 0.0
        %519 = vmatpush.msra.mxu0 0.0
        %520 = vmatpush.msra.mxu0 0.0
        %521 = vmatpush.msra.mxu0 0.0
        %522 = vmatpush.msra.mxu0 0.0
        %523 = vmatpush.msra.mxu0 0.0
        %524 = vmatpush.msra.mxu0 0.0
        %525 = vmatpush.msra.mxu0 0.0
        %526 = vmatpush.msra.mxu0 %v506
        %527 = vmatpush.msra.mxu0 %v505
        %528 = vmatpush.msra.mxu0 %v504
        %529 = vmatpush.msra.mxu0 %v503
        %530 = vmatmul.f32.gmra.mxu0 %v512
        %v531 = vpop.f32.mrf.mxu0
        %v532 = vadd.f32 0.0, %v531
        %533 = vdwg.mxu0
        %v534 = vadd.f32 %v484, %v532
        %v535 = vrot.slane %v233, 4
        %v536 = vrot.slane %v234, 4
        %537 = vrot.lane.b32.xlu0 %v535, 102
        %v538 = vpop.permute.xlu0 %537
        %539 = vrot.lane.b32.xlu0 %v536, 102
        %v540 = vpop.permute.xlu0 %539
        %v541 = vsel %vm502, %v538, %v540
        %v543 = vmax.f32 %v485, %v541
        %544 = vrot.lane.b32.xlu0 %v231, 98
        %v545 = vpop.permute.xlu0 %544
        %546 = vrot.lane.b32.xlu0 %v232, 98
        %v547 = vpop.permute.xlu0 %546
        %548 = vrot.lane.b32.xlu0 %v233, 98
        %v549 = vpop.permute.xlu0 %548
        %550 = vrot.lane.b32.xlu0 %v234, 98
        %v551 = vpop.permute.xlu0 %550
        %552 = vrot.lane.b32.xlu0 %v235, 98
        %v553 = vpop.permute.xlu0 %552
        %554 = vrot.lane.b32.xlu0 %v236, 98
        %v555 = vpop.permute.xlu0 %554
        %556 = vrot.lane.b32.xlu0 %v237, 98
        %v557 = vpop.permute.xlu0 %556
        %558 = vrot.lane.b32.xlu0 %v238, 98
        %v559 = vpop.permute.xlu0 %558
        %vm560 = vcmask 801792
        %v561 = vsel %vm560, %v545, %v547
        %v562 = vsel %vm560, %v549, %v551
        %v563 = vsel %vm560, %v553, %v555
        %v564 = vsel %vm560, %v557, %v559
        %v570 = vsel %vm272, %v225, 0
        %572 = vmatpush.msra.mxu0 0.0
        %573 = vmatpush.msra.mxu0 0.0
        %574 = vmatpush.msra.mxu0 0.0
        %575 = vmatpush.msra.mxu0 0.0
        %576 = vmatpush.msra.mxu0 0.0
        %577 = vmatpush.msra.mxu0 0.0
        %578 = vmatpush.msra.mxu0 0.0
        %579 = vmatpush.msra.mxu0 0.0
        %580 = vmatpush.msra.mxu0 0.0
        %581 = vmatpush.msra.mxu0 0.0
        %582 = vmatpush.msra.mxu0 0.0
        %583 = vmatpush.msra.mxu0 0.0
        %584 = vmatpush.msra.mxu0 %v564
        %585 = vmatpush.msra.mxu0 %v563
        %586 = vmatpush.msra.mxu0 %v562
        %587 = vmatpush.msra.mxu0 %v561
        %588 = vmatmul.f32.gmra.mxu0 %v570
        %v589 = vpop.f32.mrf.mxu0
        %v590 = vadd.f32 0.0, %v589
        %591 = vdwg.mxu0
        %v592 = vadd.f32 %v534, %v590
        %v593 = vmax.f32 %v543, %v561
        %594 = vrot.lane.b32.xlu0 %v231, 97
        %v595 = vpop.permute.xlu0 %594
        %596 = vrot.lane.b32.xlu0 %v232, 97
        %v597 = vpop.permute.xlu0 %596
        %598 = vrot.lane.b32.xlu0 %v233, 97
        %v599 = vpop.permute.xlu0 %598
        %600 = vrot.lane.b32.xlu0 %v234, 97
        %v601 = vpop.permute.xlu0 %600
        %602 = vrot.lane.b32.xlu0 %v235, 97
        %v603 = vpop.permute.xlu0 %602
        %604 = vrot.lane.b32.xlu0 %v236, 97
        %v605 = vpop.permute.xlu0 %604
        %606 = vrot.lane.b32.xlu0 %v237, 97
        %v607 = vpop.permute.xlu0 %606
        %608 = vrot.lane.b32.xlu0 %v238, 97
        %v609 = vpop.permute.xlu0 %608
        %vm610 = vcmask 793600
        %v611 = vsel %vm610, %v595, %v597
        %v612 = vsel %vm610, %v599, %v601
        %v613 = vsel %vm610, %v603, %v605
        %v614 = vsel %vm610, %v607, %v609
        %v620 = vsel %vm272, %v226, 0
        %622 = vmatpush.msra.mxu0 0.0
        %623 = vmatpush.msra.mxu0 0.0
        %624 = vmatpush.msra.mxu0 0.0
        %625 = vmatpush.msra.mxu0 0.0
        %626 = vmatpush.msra.mxu0 0.0
        %627 = vmatpush.msra.mxu0 0.0
        %628 = vmatpush.msra.mxu0 0.0
        %629 = vmatpush.msra.mxu0 0.0
        %630 = vmatpush.msra.mxu0 0.0
        %631 = vmatpush.msra.mxu0 0.0
        %632 = vmatpush.msra.mxu0 0.0
        %633 = vmatpush.msra.mxu0 0.0
        %634 = vmatpush.msra.mxu0 %v614
        %635 = vmatpush.msra.mxu0 %v613
        %636 = vmatpush.msra.mxu0 %v612
        %637 = vmatpush.msra.mxu0 %v611
        %638 = vmatmul.f32.gmra.mxu0 %v620
        %v639 = vpop.f32.mrf.mxu0
        %v640 = vadd.f32 0.0, %v639
        %641 = vdwg.mxu0
        %v642 = vadd.f32 %v592, %v640
        %v643 = vrot.slane %v231, 4
        %v644 = vrot.slane %v232, 4
        %645 = vrot.lane.b32.xlu0 %v643, 97
        %v646 = vpop.permute.xlu0 %645
        %647 = vrot.lane.b32.xlu0 %v644, 97
        %v648 = vpop.permute.xlu0 %647
        %v649 = vsel %vm610, %v646, %v648
        %v651 = vmax.f32 %v593, %v649
        %v652 = vmax.f32 %v642, 0.0
        %653 = vst [vmem:[%s211] sm:$0xf] %v652
        %v654 = vmax.f32 %v651, 0.0
        %655 = vst [vmem:[%s218 - $0x4] sm:$0xf0] %v654
        %s656 = sand.u32 %s80, 1
        %s657 = scalar_lea.sflag [#allocation4], %s656
        %s658 = sand.u32 %s80, 1
        %s659 = smul.addr %s658, 4
        %s660 = scalar_lea.vmem [#allocation7], %s659
        %s661 = sand.u32 %s106, 1
        %s662 = scalar_lea.sflag [#allocation9], %s661
        %s663 = sand.u32 %s106, 1
        %s664 = smul.addr %s663, 4
        %s665 = scalar_lea.vmem [#allocation8], %s664
        // Predicated region
        $region37: #{tpu_custom_call.1} parent=27 // pred_check
          %p666 = pneg %p90
        $region38: #{tpu_custom_call.1} parent=27 // pred_check_branch
          %668 = sbr.rel (%p666) target = $region40
        $region39: #{tpu_custom_call.1} parent=27 // pred_region
          %670 = vsyncadd %s657, 0
          %s671 = smul.addr %s25, 4
          %s672 = scalar_lea.hbm %s2, %s671
          %s674 = sshll.u32 %s660, 4
          %s675 = int_to_ptr.vmem [resolvable:$true] %s674
          %s676 = sshll.u32 %s672, 4
          %s677 = int_to_ptr.hbm [resolvable:$true] %s676
          %679 = dma.vmem_to_hbm [thread:$0]  %s675, 64, %s677, %s657
        $region40: #{tpu_custom_call.1} parent=27 // pred_fallthru
          _
        // Predicated region
        $region41: #{tpu_custom_call.1} parent=27 // pred_check
          %p680 = pneg %p116
        $region42: #{tpu_custom_call.1} parent=27 // pred_check_branch
          %682 = sbr.rel (%p680) target = $region44
        $region43: #{tpu_custom_call.1} parent=27 // pred_region
          %684 = vsyncadd %s662, 0
          %s685 = smul.addr %s25, 4
          %s686 = scalar_lea.hbm %s3, %s685
          %s688 = sshll.u32 %s665, 4
          %s689 = int_to_ptr.vmem [resolvable:$true] %s688
          %s690 = sshll.u32 %s686, 4
          %s691 = int_to_ptr.hbm [resolvable:$true] %s690
          %693 = dma.vmem_to_hbm [thread:$0]  %s689, 64, %s691, %s662
        $region44: #{tpu_custom_call.1} parent=27 // pred_fallthru
          _
      $region28: #{tpu_custom_call.1} parent=5 // pred_fallthru
        _
      %p694 = scmp.le.s32.totalorder 2, %s20
      // Predicated region
      $region45: #{tpu_custom_call.1} parent=5 // pred_check
        %p695 = pneg %p694
      $region46: #{tpu_custom_call.1} parent=5 // pred_check_branch
        %697 = sbr.rel (%p695) target = $region48
      $region47: #{tpu_custom_call.1} parent=5 // pred_region
        %s698 = ssub.s32 %s20, 2
        // Predicated region
        $region49: #{tpu_custom_call.1} parent=47 // pred_check
          %p699 = pneg %p96
        $region50: #{tpu_custom_call.1} parent=47 // pred_check_branch
          %701 = sbr.rel (%p699) target = $region52
        $region51: #{tpu_custom_call.1} parent=47 // pred_region
          %s702 = sand.u32 %s81, 1
          %s703 = scalar_lea.sflag [#allocation4], %s702
          %s704 = sand.u32 %s81, 1
          %s705 = smul.addr %s704, 4
          %s706 = scalar_lea.vmem [#allocation7], %s705
          %708 = dma.done %s703, 64
        $region52: #{tpu_custom_call.1} parent=47 // pred_fallthru
          _
        // Predicated region
        $region53: #{tpu_custom_call.1} parent=47 // pred_check
          %p709 = pneg %p122
        $region54: #{tpu_custom_call.1} parent=47 // pred_check_branch
          %711 = sbr.rel (%p709) target = $region56
        $region55: #{tpu_custom_call.1} parent=47 // pred_region
          %s712 = sand.u32 %s107, 1
          %s713 = scalar_lea.sflag [#allocation9], %s712
          %s714 = sand.u32 %s107, 1
          %s715 = smul.addr %s714, 4
          %s716 = scalar_lea.vmem [#allocation8], %s715
          %718 = dma.done %s713, 64
        $region56: #{tpu_custom_call.1} parent=47 // pred_fallthru
          _
      $region48: #{tpu_custom_call.1} parent=5 // pred_fallthru
        _
    $region6: #{tpu_custom_call.1} parent=1 // loop_footer
      %s24 = sadd.s32 1, %s20
    $region7: #{tpu_custom_call.1} parent=1 // loop_footer_branch
      %19 = sbr.rel target = $region3
    $region8: #{tpu_custom_call.1} parent=1 // loop_exit
      _
    %719 = vsyncpa [#allocation3], 1
    %s720 = scalar_lea.sflag [#allocation3], 1
    %721 = vsyncpa %s720, 1
    %722 = vsyncpa [#allocation6], 1
    %723 = vsyncpa [#allocation4], 1
    %s724 = scalar_lea.sflag [#allocation4], 1
    %725 = vsyncpa %s724, 1
    %726 = vsyncpa [#allocation9], 1
    %s727 = scalar_lea.sflag [#allocation9], 1
    %728 = vsyncpa %s727, 1

</llo_original>
